<compile_context>
chip_gen: v6e
topology: v6e:2x2x1
jax: 0.10.0
libtpu: 0.0.40
codegen_flags: <defaults>
</compile_context>

<pallas_src>
import functools

import jax
import jax.numpy as jnp
from jax.experimental import pallas as pl
from jax.experimental.pallas import tpu as pltpu

EPS = 1e-12


def _round_up(x, m):
    return ((x + m - 1) // m) * m


def _layernorm(x, gamma, beta, h_real, h_pad):
    # PyTorch LayerNorm: biased variance over the (real) last dim, eps inside
    # rsqrt. Padded columns of x are exactly 0 (zero-padded weights/bias), so
    # the plain sum already gives the correct mean; only the squared
    # deviations need masking.
    mean = jnp.sum(x, axis=-1, keepdims=True) * (1.0 / h_real)
    xc = x - mean
    if h_pad != h_real:
        col = jax.lax.broadcasted_iota(jnp.int32, (1, h_pad), 1)
        sq = jnp.where(col < h_real, xc * xc, 0.0)
    else:
        sq = xc * xc
    var = jnp.sum(sq, axis=-1, keepdims=True) * (1.0 / h_real)
    inv = jax.lax.rsqrt(var + EPS)
    # gamma/beta carry the folded 0.5 from (x + y) / 2 and are zero in padded
    # columns, so padded output columns come out exactly 0.
    return xc * inv * gamma + beta


def _encoder_kernel(feats_ref, boxes_ref,
                    wv_ref, bv_ref, gv_ref, betav_ref,
                    wb_ref, bb_ref, gb_ref, betab_ref,
                    out_ref, *, h_real, h_pad, pos_dim):
    # visn_fc: bf16 MXU matmul with f32 accumulation, then f32 LayerNorm.
    x = jnp.dot(feats_ref[...], wv_ref[...], preferred_element_type=jnp.float32)
    x = x + bv_ref[...]
    x = _layernorm(x, gv_ref[...], betav_ref[...], h_real, h_pad)

    # box_fc: K = pos_dim (=4) would waste >96% of the MXU array, so do it as a
    # few VPU broadcast-FMAs (free filler under the feats matmul).
    boxes = boxes_ref[...]                    # (tm, pos_dim) f32
    wb = wb_ref[...]                          # (pos_dim, h_pad) f32
    y = bb_ref[...]                           # (1, h_pad) f32
    for k in range(pos_dim):
        y = y + boxes[:, k:k + 1] * wb[k:k + 1, :]
    y = _layernorm(y, gb_ref[...], betab_ref[...], h_real, h_pad)

    # (x + y) / 2 with the 0.5 already folded into the LN affine params.
    # TODO(synk): training-mode dropout (p=0.1) not implemented (inference path).
    out_ref[...] = (x + y).astype(out_ref.dtype)


def visual_feat_encoder(feats, boxes, params, *, row_tile=256):
    """feats: (B, N, feat_dim); boxes: (B, N, pos_dim) -> (B, N, hidden)."""
    B, N, FD = feats.shape
    _, _, PD = boxes.shape
    H = params["wv"].shape[1]
    out_dtype = feats.dtype

    M = B * N
    # Row tile as large as the problem allows (multiple of 16 for bf16 sublane
    # packing); rows are zero-padded so there is no divisibility constraint.
    tm = _round_up(min(row_tile, M), 16)
    M_pad = _round_up(M, tm)
    H_pad = _round_up(H, 128)                 # lane-dense output stores

    feats2 = feats.reshape(M, FD).astype(jnp.bfloat16)
    boxes2 = boxes.reshape(M, PD).astype(jnp.float32)
    if M_pad != M:
        feats2 = jnp.pad(feats2, ((0, M_pad - M), (0, 0)))
        boxes2 = jnp.pad(boxes2, ((0, M_pad - M), (0, 0)))

    def pad_h(a, dtype):
        a = a.astype(dtype)
        return a if H_pad == H else jnp.pad(a, ((0, 0), (0, H_pad - H)))

    wv = pad_h(params["wv"], jnp.bfloat16)    # (FD, H_pad) bf16
    wb = pad_h(params["wb"], jnp.float32)     # (PD, H_pad) f32
    bv = pad_h(params["bv"], jnp.float32)
    bb = pad_h(params["bb"], jnp.float32)
    # Fold the trailing "/ 2" into the LayerNorm affine params (one time).
    gv = pad_h(params["gv"] * 0.5, jnp.float32)
    betav = pad_h(params["betav"] * 0.5, jnp.float32)
    gb = pad_h(params["gb"] * 0.5, jnp.float32)
    betab = pad_h(params["betab"] * 0.5, jnp.float32)

    grid = (M_pad // tm,)
    kernel = functools.partial(_encoder_kernel, h_real=H, h_pad=H_pad, pos_dim=PD)

    # VMEM budget: single-buffered constants + double-buffered row tiles, 2x slack,
    # clamped to [32 MiB, 64 MiB] so it is safe on v5e/v6e/v7x alike.
    itemsize = jnp.dtype(out_dtype).itemsize
    const_bytes = wv.size * 2 + wb.size * 4 + 6 * H_pad * 4
    tile_bytes = 2 * (tm * FD * 2 + tm * PD * 4 + tm * H_pad * itemsize)
    vmem_limit = int(min(max(2 * (const_bytes + tile_bytes), 32 << 20), 64 << 20))

    row_spec = lambda d: pl.BlockSpec((tm, d), lambda i: (i, 0))

    def build(single_buffer_consts):
        def const_spec(r, c):
            kwargs = {}
            if single_buffer_consts:
                # Constant index_map -> no need to double-buffer the weights.
                kwargs["pipeline_mode"] = pl.Buffered(1)
            return pl.BlockSpec((r, c), lambda i: (0, 0), **kwargs)

        return pl.pallas_call(
            kernel,
            out_shape=jax.ShapeDtypeStruct((M_pad, H_pad), out_dtype),
            grid_spec=pltpu.PrefetchScalarGridSpec(
                num_scalar_prefetch=0,
                grid=grid,
                in_specs=[
                    row_spec(FD),              # feats tile (bf16)
                    row_spec(PD),              # boxes tile (f32)
                    const_spec(FD, H_pad),     # visn_fc weight (in, out), bf16
                    const_spec(1, H_pad),      # visn_fc bias
                    const_spec(1, H_pad),      # visn_layer_norm gamma (*0.5)
                    const_spec(1, H_pad),      # visn_layer_norm beta  (*0.5)
                    const_spec(PD, H_pad),     # box_fc weight (in, out)
                    const_spec(1, H_pad),      # box_fc bias
                    const_spec(1, H_pad),      # box_layer_norm gamma (*0.5)
                    const_spec(1, H_pad),      # box_layer_norm beta  (*0.5)
                ],
                out_specs=row_spec(H_pad),
            ),
            compiler_params=pltpu.CompilerParams(
                # Parallel row axis shards the grid across the 2 TCs on v7x.
                dimension_semantics=("parallel",),
                vmem_limit_bytes=vmem_limit),
        )

    args = (feats2, boxes2, wv, bv, gv, betav, wb, bb, gb, betab)
    try:
        out = jax.block_until_ready(build(True)(*args))
    except Exception:
        # Fallback for Pallas builds without single-buffer pipeline_mode support.
        out = build(False)(*args)

    return out[:M, :H].reshape(B, N, H)


def init_params(key, feat_dim, pos_dim, hidden):
    ks = jax.random.split(key, 4)
    # nn.Linear default init: U(-1/sqrt(fan_in), 1/sqrt(fan_in)); stored (in, out).
    lim_v = 1.0 / jnp.sqrt(feat_dim)
    lim_b = 1.0 / jnp.sqrt(pos_dim)
    return {
        "wv": jax.random.uniform(ks[0], (feat_dim, hidden), jnp.float32, -lim_v, lim_v),
        "bv": jax.random.uniform(ks[1], (1, hidden), jnp.float32, -lim_v, lim_v),
        "gv": jnp.ones((1, hidden), jnp.float32),
        "betav": jnp.zeros((1, hidden), jnp.float32),
        "wb": jax.random.uniform(ks[2], (pos_dim, hidden), jnp.float32, -lim_b, lim_b),
        "bb": jax.random.uniform(ks[3], (1, hidden), jnp.float32, -lim_b, lim_b),
        "gb": jnp.ones((1, hidden), jnp.float32),
        "betab": jnp.zeros((1, hidden), jnp.float32),
    }


def _reference(feats, boxes, params):
    x = feats @ params["wv"] + params["bv"]
    mean = x.mean(-1, keepdims=True)
    var = ((x - mean) ** 2).mean(-1, keepdims=True)
    x = (x - mean) / jnp.sqrt(var + EPS) * params["gv"] + params["betav"]
    y = boxes @ params["wb"] + params["bb"]
    mean = y.mean(-1, keepdims=True)
    var = ((y - mean) ** 2).mean(-1, keepdims=True)
    y = (y - mean) / jnp.sqrt(var + EPS) * params["gb"] + params["betab"]
    return (x + y) / 2.0


if __name__ == "__main__":
    B, N = 2, 9          # batch, num visual objects (M=18: exercises row padding)
    FEAT_DIM, POS_DIM, HIDDEN = 32, 4, 32

    key = jax.random.PRNGKey(0)
    k_feat, k_box, k_param = jax.random.split(key, 3)

    feats = jax.random.normal(k_feat, (B, N, FEAT_DIM), jnp.float32)
    boxes = jax.random.uniform(k_box, (B, N, POS_DIM), jnp.float32)
    params = init_params(k_param, FEAT_DIM, POS_DIM, HIDDEN)

    out = visual_feat_encoder(feats, boxes, params)
    out = jax.block_until_ready(out)

    ref = _reference(feats, boxes, params)
    assert out.shape == (B, N, HIDDEN)
    # bf16 matmul operands with f32 accumulation -> loosened tolerance vs f32 ref.
    assert jnp.allclose(out, ref, atol=3e-2, rtol=3e-2), "mismatch vs reference"

    print("KERNEL_OK")
</pallas_src>

<mosaic_0001>
module attributes {stable_mosaic.version = 11 : i64} {
  func.func @_encoder_kernel(%arg0: i32, %arg1: memref<32x32xbf16, #tpu.memory_space<vmem>>, %arg2: memref<32x4xf32, #tpu.memory_space<vmem>>, %arg3: memref<32x128xbf16, #tpu.memory_space<vmem>>, %arg4: memref<1x128xf32, #tpu.memory_space<vmem>>, %arg5: memref<1x128xf32, #tpu.memory_space<vmem>>, %arg6: memref<1x128xf32, #tpu.memory_space<vmem>>, %arg7: memref<4x128xf32, #tpu.memory_space<vmem>>, %arg8: memref<1x128xf32, #tpu.memory_space<vmem>>, %arg9: memref<1x128xf32, #tpu.memory_space<vmem>>, %arg10: memref<1x128xf32, #tpu.memory_space<vmem>>, %arg11: memref<32x128xf32, #tpu.memory_space<vmem>>) attributes {dimension_semantics = [#tpu.dimension_semantics<parallel>], iteration_bounds = array<i64: 1>, scalar_prefetch = 0 : i64, scratch_operands = 0 : i64, tpu.core_type = #tpu.core_type<tc>, window_params = [{transform_indices = @transform_0, window_bounds = array<i64: 32, 32>}, {transform_indices = @transform_1, window_bounds = array<i64: 32, 4>}, {pipeline_mode = #tpu.pipeline_mode<synchronous>, transform_indices = @transform_2, window_bounds = array<i64: 32, 128>}, {pipeline_mode = #tpu.pipeline_mode<synchronous>, transform_indices = @transform_3, window_bounds = array<i64: 1, 128>}, {pipeline_mode = #tpu.pipeline_mode<synchronous>, transform_indices = @transform_4, window_bounds = array<i64: 1, 128>}, {pipeline_mode = #tpu.pipeline_mode<synchronous>, transform_indices = @transform_5, window_bounds = array<i64: 1, 128>}, {pipeline_mode = #tpu.pipeline_mode<synchronous>, transform_indices = @transform_6, window_bounds = array<i64: 4, 128>}, {pipeline_mode = #tpu.pipeline_mode<synchronous>, transform_indices = @transform_7, window_bounds = array<i64: 1, 128>}, {pipeline_mode = #tpu.pipeline_mode<synchronous>, transform_indices = @transform_8, window_bounds = array<i64: 1, 128>}, {pipeline_mode = #tpu.pipeline_mode<synchronous>, transform_indices = @transform_9, window_bounds = array<i64: 1, 128>}, {transform_indices = @transform_10, window_bounds = array<i64: 32, 128>}]} {
    %c0 = arith.constant 0 : index
    %c0_0 = arith.constant 0 : index
    %0 = vector.load %arg1[%c0, %c0_0] : memref<32x32xbf16, #tpu.memory_space<vmem>>, vector<32x32xbf16>
    %c0_1 = arith.constant 0 : index
    %c0_2 = arith.constant 0 : index
    %1 = vector.load %arg3[%c0_1, %c0_2] : memref<32x128xbf16, #tpu.memory_space<vmem>>, vector<32x128xbf16>
    %cst = arith.constant dense<0.000000e+00> : vector<32x128xf32>
    %2 = tpu.matmul %0, %1, %cst {dimension_numbers = #tpu.dot_dimension_numbers<[1], [0], [0], [1], [0, 0, 1, 1], [], []>} : vector<32x32xbf16>, vector<32x128xbf16>, vector<32x128xf32> -> vector<32x128xf32>
    %c0_3 = arith.constant 0 : index
    %c0_4 = arith.constant 0 : index
    %3 = vector.load %arg4[%c0_3, %c0_4] : memref<1x128xf32, #tpu.memory_space<vmem>>, vector<1x128xf32>
    %4 = vector.broadcast %3 : vector<1x128xf32> to vector<32x128xf32>
    %5 = arith.addf %2, %4 : vector<32x128xf32>
    %c0_5 = arith.constant 0 : index
    %c0_6 = arith.constant 0 : index
    %6 = vector.load %arg5[%c0_5, %c0_6] : memref<1x128xf32, #tpu.memory_space<vmem>>, vector<1x128xf32>
    %c0_7 = arith.constant 0 : index
    %c0_8 = arith.constant 0 : index
    %7 = vector.load %arg6[%c0_7, %c0_8] : memref<1x128xf32, #tpu.memory_space<vmem>>, vector<1x128xf32>
    %cst_9 = arith.constant dense<0.000000e+00> : vector<32xf32>
    %8 = vector.multi_reduction <add>, %5, %cst_9 [1] : vector<32x128xf32> to vector<32xf32>
    %9 = vector.shape_cast %8 : vector<32xf32> to vector<32x1xf32>
    %cst_10 = arith.constant 3.125000e-02 : f32
    %10 = vector.broadcast %cst_10 : f32 to vector<32x1xf32>
    %11 = arith.mulf %9, %10 : vector<32x1xf32>
    %12 = vector.broadcast %11 : vector<32x1xf32> to vector<32x128xf32>
    %13 = arith.subf %5, %12 : vector<32x128xf32>
    %14 = tpu.iota {dimensions = array<i32: 1>} : vector<1x128xi32>
    %c32_i32 = arith.constant 32 : i32
    %15 = vector.broadcast %c32_i32 : i32 to vector<1x128xi32>
    %16 = arith.cmpi slt, %14, %15 : vector<1x128xi32>
    %17 = arith.mulf %13, %13 : vector<32x128xf32>
    %cst_11 = arith.constant 0.000000e+00 : f32
    %18 = vector.shape_cast %16 : vector<1x128xi1> to vector<1x128xi1>
    %19 = vector.broadcast %18 : vector<1x128xi1> to vector<32x128xi1>
    %20 = vector.broadcast %cst_11 : f32 to vector<32x128xf32>
    %21 = arith.select %19, %17, %20 : vector<32x128xi1>, vector<32x128xf32>
    %cst_12 = arith.constant dense<0.000000e+00> : vector<32xf32>
    %22 = vector.multi_reduction <add>, %21, %cst_12 [1] : vector<32x128xf32> to vector<32xf32>
    %23 = vector.shape_cast %22 : vector<32xf32> to vector<32x1xf32>
    %cst_13 = arith.constant 3.125000e-02 : f32
    %24 = vector.broadcast %cst_13 : f32 to vector<32x1xf32>
    %25 = arith.mulf %23, %24 : vector<32x1xf32>
    %cst_14 = arith.constant 9.99999996E-13 : f32
    %26 = vector.broadcast %cst_14 : f32 to vector<32x1xf32>
    %27 = arith.addf %25, %26 : vector<32x1xf32>
    %28 = math.rsqrt %27 : vector<32x1xf32>
    %29 = vector.broadcast %28 : vector<32x1xf32> to vector<32x128xf32>
    %30 = arith.mulf %13, %29 : vector<32x128xf32>
    %31 = vector.broadcast %6 : vector<1x128xf32> to vector<32x128xf32>
    %32 = arith.mulf %30, %31 : vector<32x128xf32>
    %33 = vector.broadcast %7 : vector<1x128xf32> to vector<32x128xf32>
    %34 = arith.addf %32, %33 : vector<32x128xf32>
    %c0_15 = arith.constant 0 : index
    %c0_16 = arith.constant 0 : index
    %35 = vector.load %arg2[%c0_15, %c0_16] : memref<32x4xf32, #tpu.memory_space<vmem>>, vector<32x4xf32>
    %c0_17 = arith.constant 0 : index
    %c0_18 = arith.constant 0 : index
    %36 = vector.load %arg7[%c0_17, %c0_18] : memref<4x128xf32, #tpu.memory_space<vmem>>, vector<4x128xf32>
    %c0_19 = arith.constant 0 : index
    %c0_20 = arith.constant 0 : index
    %37 = vector.load %arg8[%c0_19, %c0_20] : memref<1x128xf32, #tpu.memory_space<vmem>>, vector<1x128xf32>
    %38 = vector.extract_strided_slice %35 {offsets = [0, 0], sizes = [32, 1], strides = [1, 1]} : vector<32x4xf32> to vector<32x1xf32>
    %39 = vector.extract_strided_slice %36 {offsets = [0, 0], sizes = [1, 128], strides = [1, 1]} : vector<4x128xf32> to vector<1x128xf32>
    %40 = vector.broadcast %38 : vector<32x1xf32> to vector<32x128xf32>
    %41 = vector.broadcast %39 : vector<1x128xf32> to vector<32x128xf32>
    %42 = arith.mulf %40, %41 : vector<32x128xf32>
    %43 = vector.broadcast %37 : vector<1x128xf32> to vector<32x128xf32>
    %44 = arith.addf %43, %42 : vector<32x128xf32>
    %45 = vector.extract_strided_slice %35 {offsets = [0, 1], sizes = [32, 1], strides = [1, 1]} : vector<32x4xf32> to vector<32x1xf32>
    %46 = vector.extract_strided_slice %36 {offsets = [1, 0], sizes = [1, 128], strides = [1, 1]} : vector<4x128xf32> to vector<1x128xf32>
    %47 = vector.broadcast %45 : vector<32x1xf32> to vector<32x128xf32>
    %48 = vector.broadcast %46 : vector<1x128xf32> to vector<32x128xf32>
    %49 = arith.mulf %47, %48 : vector<32x128xf32>
    %50 = arith.addf %44, %49 : vector<32x128xf32>
    %51 = vector.extract_strided_slice %35 {offsets = [0, 2], sizes = [32, 1], strides = [1, 1]} : vector<32x4xf32> to vector<32x1xf32>
    %52 = vector.extract_strided_slice %36 {offsets = [2, 0], sizes = [1, 128], strides = [1, 1]} : vector<4x128xf32> to vector<1x128xf32>
    %53 = vector.broadcast %51 : vector<32x1xf32> to vector<32x128xf32>
    %54 = vector.broadcast %52 : vector<1x128xf32> to vector<32x128xf32>
    %55 = arith.mulf %53, %54 : vector<32x128xf32>
    %56 = arith.addf %50, %55 : vector<32x128xf32>
    %57 = vector.extract_strided_slice %35 {offsets = [0, 3], sizes = [32, 1], strides = [1, 1]} : vector<32x4xf32> to vector<32x1xf32>
    %58 = vector.extract_strided_slice %36 {offsets = [3, 0], sizes = [1, 128], strides = [1, 1]} : vector<4x128xf32> to vector<1x128xf32>
    %59 = vector.broadcast %57 : vector<32x1xf32> to vector<32x128xf32>
    %60 = vector.broadcast %58 : vector<1x128xf32> to vector<32x128xf32>
    %61 = arith.mulf %59, %60 : vector<32x128xf32>
    %62 = arith.addf %56, %61 : vector<32x128xf32>
    %c0_21 = arith.constant 0 : index
    %c0_22 = arith.constant 0 : index
    %63 = vector.load %arg9[%c0_21, %c0_22] : memref<1x128xf32, #tpu.memory_space<vmem>>, vector<1x128xf32>
    %c0_23 = arith.constant 0 : index
    %c0_24 = arith.constant 0 : index
    %64 = vector.load %arg10[%c0_23, %c0_24] : memref<1x128xf32, #tpu.memory_space<vmem>>, vector<1x128xf32>
    %cst_25 = arith.constant dense<0.000000e+00> : vector<32xf32>
    %65 = vector.multi_reduction <add>, %62, %cst_25 [1] : vector<32x128xf32> to vector<32xf32>
    %66 = vector.shape_cast %65 : vector<32xf32> to vector<32x1xf32>
    %cst_26 = arith.constant 3.125000e-02 : f32
    %67 = vector.broadcast %cst_26 : f32 to vector<32x1xf32>
    %68 = arith.mulf %66, %67 : vector<32x1xf32>
    %69 = vector.broadcast %68 : vector<32x1xf32> to vector<32x128xf32>
    %70 = arith.subf %62, %69 : vector<32x128xf32>
    %71 = tpu.iota {dimensions = array<i32: 1>} : vector<1x128xi32>
    %c32_i32_27 = arith.constant 32 : i32
    %72 = vector.broadcast %c32_i32_27 : i32 to vector<1x128xi32>
    %73 = arith.cmpi slt, %71, %72 : vector<1x128xi32>
    %74 = arith.mulf %70, %70 : vector<32x128xf32>
    %cst_28 = arith.constant 0.000000e+00 : f32
    %75 = vector.shape_cast %73 : vector<1x128xi1> to vector<1x128xi1>
    %76 = vector.broadcast %75 : vector<1x128xi1> to vector<32x128xi1>
    %77 = vector.broadcast %cst_28 : f32 to vector<32x128xf32>
    %78 = arith.select %76, %74, %77 : vector<32x128xi1>, vector<32x128xf32>
    %cst_29 = arith.constant dense<0.000000e+00> : vector<32xf32>
    %79 = vector.multi_reduction <add>, %78, %cst_29 [1] : vector<32x128xf32> to vector<32xf32>
    %80 = vector.shape_cast %79 : vector<32xf32> to vector<32x1xf32>
    %cst_30 = arith.constant 3.125000e-02 : f32
    %81 = vector.broadcast %cst_30 : f32 to vector<32x1xf32>
    %82 = arith.mulf %80, %81 : vector<32x1xf32>
    %cst_31 = arith.constant 9.99999996E-13 : f32
    %83 = vector.broadcast %cst_31 : f32 to vector<32x1xf32>
    %84 = arith.addf %82, %83 : vector<32x1xf32>
    %85 = math.rsqrt %84 : vector<32x1xf32>
    %86 = vector.broadcast %85 : vector<32x1xf32> to vector<32x128xf32>
    %87 = arith.mulf %70, %86 : vector<32x128xf32>
    %88 = vector.broadcast %63 : vector<1x128xf32> to vector<32x128xf32>
    %89 = arith.mulf %87, %88 : vector<32x128xf32>
    %90 = vector.broadcast %64 : vector<1x128xf32> to vector<32x128xf32>
    %91 = arith.addf %89, %90 : vector<32x128xf32>
    %92 = arith.addf %34, %91 : vector<32x128xf32>
    %c0_32 = arith.constant 0 : index
    %c0_33 = arith.constant 0 : index
    %93 = vector.load %arg11[%c0_32, %c0_33] : memref<32x128xf32, #tpu.memory_space<vmem>>, vector<32x128xf32>
    tpu.vector_store %arg11[%c0_32, %c0_33], %92 {strides = array<i32>} : memref<32x128xf32, #tpu.memory_space<vmem>>, vector<32x128xf32>,
    return
  }
  func.func @transform_0(%arg0: i32) -> (i32, i32) {
    %c0_i32 = arith.constant 0 : i32
    %c0_i32_0 = arith.constant 0 : i32
    return %arg0, %c0_i32 : i32, i32
  }
  func.func @transform_1(%arg0: i32) -> (i32, i32) {
    %c0_i32 = arith.constant 0 : i32
    %c0_i32_0 = arith.constant 0 : i32
    return %arg0, %c0_i32 : i32, i32
  }
  func.func @transform_2(%arg0: i32) -> (i32, i32) {
    %c0_i32 = arith.constant 0 : i32
    %c0_i32_0 = arith.constant 0 : i32
    %c0_i32_1 = arith.constant 0 : i32
    return %c0_i32, %c0_i32_0 : i32, i32
  }
  func.func @transform_3(%arg0: i32) -> (i32, i32) {
    %c0_i32 = arith.constant 0 : i32
    %c0_i32_0 = arith.constant 0 : i32
    %c0_i32_1 = arith.constant 0 : i32
    return %c0_i32, %c0_i32_0 : i32, i32
  }
  func.func @transform_4(%arg0: i32) -> (i32, i32) {
    %c0_i32 = arith.constant 0 : i32
    %c0_i32_0 = arith.constant 0 : i32
    %c0_i32_1 = arith.constant 0 : i32
    return %c0_i32, %c0_i32_0 : i32, i32
  }
  func.func @transform_5(%arg0: i32) -> (i32, i32) {
    %c0_i32 = arith.constant 0 : i32
    %c0_i32_0 = arith.constant 0 : i32
    %c0_i32_1 = arith.constant 0 : i32
    return %c0_i32, %c0_i32_0 : i32, i32
  }
  func.func @transform_6(%arg0: i32) -> (i32, i32) {
    %c0_i32 = arith.constant 0 : i32
    %c0_i32_0 = arith.constant 0 : i32
    %c0_i32_1 = arith.constant 0 : i32
    return %c0_i32, %c0_i32_0 : i32, i32
  }
  func.func @transform_7(%arg0: i32) -> (i32, i32) {
    %c0_i32 = arith.constant 0 : i32
    %c0_i32_0 = arith.constant 0 : i32
    %c0_i32_1 = arith.constant 0 : i32
    return %c0_i32, %c0_i32_0 : i32, i32
  }
  func.func @transform_8(%arg0: i32) -> (i32, i32) {
    %c0_i32 = arith.constant 0 : i32
    %c0_i32_0 = arith.constant 0 : i32
    %c0_i32_1 = arith.constant 0 : i32
    return %c0_i32, %c0_i32_0 : i32, i32
  }
  func.func @transform_9(%arg0: i32) -> (i32, i32) {
    %c0_i32 = arith.constant 0 : i32
    %c0_i32_0 = arith.constant 0 : i32
    %c0_i32_1 = arith.constant 0 : i32
    return %c0_i32, %c0_i32_0 : i32, i32
  }
  func.func @transform_10(%arg0: i32) -> (i32, i32) {
    %c0_i32 = arith.constant 0 : i32
    %c0_i32_0 = arith.constant 0 : i32
    return %arg0, %c0_i32 : i32, i32
  }
}

module attributes {stable_mosaic.version = 11 : i64} {
  func.func @_encoder_kernel(%arg0: i32, %arg1: memref<32x32xbf16, #tpu.memory_space<vmem>>, %arg2: memref<32x4xf32, #tpu.memory_space<vmem>>, %arg3: memref<32x128xbf16, #tpu.memory_space<vmem>>, %arg4: memref<1x128xf32, #tpu.memory_space<vmem>>, %arg5: memref<1x128xf32, #tpu.memory_space<vmem>>, %arg6: memref<1x128xf32, #tpu.memory_space<vmem>>, %arg7: memref<4x128xf32, #tpu.memory_space<vmem>>, %arg8: memref<1x128xf32, #tpu.memory_space<vmem>>, %arg9: memref<1x128xf32, #tpu.memory_space<vmem>>, %arg10: memref<1x128xf32, #tpu.memory_space<vmem>>, %arg11: memref<32x128xf32, #tpu.memory_space<vmem>>) attributes {dimension_semantics = [#tpu.dimension_semantics<parallel>], iteration_bounds = array<i64: 1>, scalar_prefetch = 0 : i64, scratch_operands = 0 : i64, tpu.core_type = #tpu.core_type<tc>, window_params = [{transform_indices = @transform_0, window_bounds = array<i64: 32, 32>}, {transform_indices = @transform_1, window_bounds = array<i64: 32, 4>}, {pipeline_mode = #tpu.pipeline_mode<synchronous>, transform_indices = @transform_2, window_bounds = array<i64: 32, 128>}, {pipeline_mode = #tpu.pipeline_mode<synchronous>, transform_indices = @transform_3, window_bounds = array<i64: 1, 128>}, {pipeline_mode = #tpu.pipeline_mode<synchronous>, transform_indices = @transform_4, window_bounds = array<i64: 1, 128>}, {pipeline_mode = #tpu.pipeline_mode<synchronous>, transform_indices = @transform_5, window_bounds = array<i64: 1, 128>}, {pipeline_mode = #tpu.pipeline_mode<synchronous>, transform_indices = @transform_6, window_bounds = array<i64: 4, 128>}, {pipeline_mode = #tpu.pipeline_mode<synchronous>, transform_indices = @transform_7, window_bounds = array<i64: 1, 128>}, {pipeline_mode = #tpu.pipeline_mode<synchronous>, transform_indices = @transform_8, window_bounds = array<i64: 1, 128>}, {pipeline_mode = #tpu.pipeline_mode<synchronous>, transform_indices = @transform_9, window_bounds = array<i64: 1, 128>}, {transform_indices = @transform_10, window_bounds = array<i64: 32, 128>}]} {
    %c0 = arith.constant 0 : index
    %c0_0 = arith.constant 0 : index
    %0 = vector.load %arg1[%c0, %c0_0] : memref<32x32xbf16, #tpu.memory_space<vmem>>, vector<32x32xbf16>
    %c0_1 = arith.constant 0 : index
    %c0_2 = arith.constant 0 : index
    %1 = vector.load %arg3[%c0_1, %c0_2] : memref<32x128xbf16, #tpu.memory_space<vmem>>, vector<32x128xbf16>
    %cst = arith.constant dense<0.000000e+00> : vector<32x128xf32>
    %2 = tpu.matmul %0, %1, %cst {dimension_numbers = #tpu.dot_dimension_numbers<[1], [0], [0], [1], [0, 0, 1, 1], [], []>} : vector<32x32xbf16>, vector<32x128xbf16>, vector<32x128xf32> -> vector<32x128xf32>
    %c0_3 = arith.constant 0 : index
    %c0_4 = arith.constant 0 : index
    %3 = vector.load %arg4[%c0_3, %c0_4] : memref<1x128xf32, #tpu.memory_space<vmem>>, vector<1x128xf32>
    %4 = vector.broadcast %3 : vector<1x128xf32> to vector<32x128xf32>
    %5 = arith.addf %2, %4 : vector<32x128xf32>
    %c0_5 = arith.constant 0 : index
    %c0_6 = arith.constant 0 : index
    %6 = vector.load %arg5[%c0_5, %c0_6] : memref<1x128xf32, #tpu.memory_space<vmem>>, vector<1x128xf32>
    %c0_7 = arith.constant 0 : index
    %c0_8 = arith.constant 0 : index
    %7 = vector.load %arg6[%c0_7, %c0_8] : memref<1x128xf32, #tpu.memory_space<vmem>>, vector<1x128xf32>
    %cst_9 = arith.constant dense<0.000000e+00> : vector<32xf32>
    %8 = vector.multi_reduction <add>, %5, %cst_9 [1] : vector<32x128xf32> to vector<32xf32>
    %9 = vector.shape_cast %8 : vector<32xf32> to vector<32x1xf32>
    %cst_10 = arith.constant 3.125000e-02 : f32
    %10 = vector.broadcast %cst_10 : f32 to vector<32x1xf32>
    %11 = arith.mulf %9, %10 : vector<32x1xf32>
    %12 = vector.broadcast %11 : vector<32x1xf32> to vector<32x128xf32>
    %13 = arith.subf %5, %12 : vector<32x128xf32>
    %14 = tpu.iota {dimensions = array<i32: 1>} : vector<1x128xi32>
    %c32_i32 = arith.constant 32 : i32
    %15 = vector.broadcast %c32_i32 : i32 to vector<1x128xi32>
    %16 = arith.cmpi slt, %14, %15 : vector<1x128xi32>
    %17 = arith.mulf %13, %13 : vector<32x128xf32>
    %cst_11 = arith.constant 0.000000e+00 : f32
    %18 = vector.shape_cast %16 : vector<1x128xi1> to vector<1x128xi1>
    %19 = vector.broadcast %18 : vector<1x128xi1> to vector<32x128xi1>
    %20 = vector.broadcast %cst_11 : f32 to vector<32x128xf32>
    %21 = arith.select %19, %17, %20 : vector<32x128xi1>, vector<32x128xf32>
    %cst_12 = arith.constant dense<0.000000e+00> : vector<32xf32>
    %22 = vector.multi_reduction <add>, %21, %cst_12 [1] : vector<32x128xf32> to vector<32xf32>
    %23 = vector.shape_cast %22 : vector<32xf32> to vector<32x1xf32>
    %cst_13 = arith.constant 3.125000e-02 : f32
    %24 = vector.broadcast %cst_13 : f32 to vector<32x1xf32>
    %25 = arith.mulf %23, %24 : vector<32x1xf32>
    %cst_14 = arith.constant 9.99999996E-13 : f32
    %26 = vector.broadcast %cst_14 : f32 to vector<32x1xf32>
    %27 = arith.addf %25, %26 : vector<32x1xf32>
    %28 = math.rsqrt %27 : vector<32x1xf32>
    %29 = vector.broadcast %28 : vector<32x1xf32> to vector<32x128xf32>
    %30 = arith.mulf %13, %29 : vector<32x128xf32>
    %31 = vector.broadcast %6 : vector<1x128xf32> to vector<32x128xf32>
    %32 = arith.mulf %30, %31 : vector<32x128xf32>
    %33 = vector.broadcast %7 : vector<1x128xf32> to vector<32x128xf32>
    %34 = arith.addf %32, %33 : vector<32x128xf32>
    %c0_15 = arith.constant 0 : index
    %c0_16 = arith.constant 0 : index
    %35 = vector.load %arg2[%c0_15, %c0_16] : memref<32x4xf32, #tpu.memory_space<vmem>>, vector<32x4xf32>
    %c0_17 = arith.constant 0 : index
    %c0_18 = arith.constant 0 : index
    %36 = vector.load %arg7[%c0_17, %c0_18] : memref<4x128xf32, #tpu.memory_space<vmem>>, vector<4x128xf32>
    %c0_19 = arith.constant 0 : index
    %c0_20 = arith.constant 0 : index
    %37 = vector.load %arg8[%c0_19, %c0_20] : memref<1x128xf32, #tpu.memory_space<vmem>>, vector<1x128xf32>
    %38 = vector.extract_strided_slice %35 {offsets = [0, 0], sizes = [32, 1], strides = [1, 1]} : vector<32x4xf32> to vector<32x1xf32>
    %39 = vector.extract_strided_slice %36 {offsets = [0, 0], sizes = [1, 128], strides = [1, 1]} : vector<4x128xf32> to vector<1x128xf32>
    %40 = vector.broadcast %38 : vector<32x1xf32> to vector<32x128xf32>
    %41 = vector.broadcast %39 : vector<1x128xf32> to vector<32x128xf32>
    %42 = arith.mulf %40, %41 : vector<32x128xf32>
    %43 = vector.broadcast %37 : vector<1x128xf32> to vector<32x128xf32>
    %44 = arith.addf %43, %42 : vector<32x128xf32>
    %45 = vector.extract_strided_slice %35 {offsets = [0, 1], sizes = [32, 1], strides = [1, 1]} : vector<32x4xf32> to vector<32x1xf32>
    %46 = vector.extract_strided_slice %36 {offsets = [1, 0], sizes = [1, 128], strides = [1, 1]} : vector<4x128xf32> to vector<1x128xf32>
    %47 = vector.broadcast %45 : vector<32x1xf32> to vector<32x128xf32>
    %48 = vector.broadcast %46 : vector<1x128xf32> to vector<32x128xf32>
    %49 = arith.mulf %47, %48 : vector<32x128xf32>
    %50 = arith.addf %44, %49 : vector<32x128xf32>
    %51 = vector.extract_strided_slice %35 {offsets = [0, 2], sizes = [32, 1], strides = [1, 1]} : vector<32x4xf32> to vector<32x1xf32>
    %52 = vector.extract_strided_slice %36 {offsets = [2, 0], sizes = [1, 128], strides = [1, 1]} : vector<4x128xf32> to vector<1x128xf32>
    %53 = vector.broadcast %51 : vector<32x1xf32> to vector<32x128xf32>
    %54 = vector.broadcast %52 : vector<1x128xf32> to vector<32x128xf32>
    %55 = arith.mulf %53, %54 : vector<32x128xf32>
    %56 = arith.addf %50, %55 : vector<32x128xf32>
    %57 = vector.extract_strided_slice %35 {offsets = [0, 3], sizes = [32, 1], strides = [1, 1]} : vector<32x4xf32> to vector<32x1xf32>
    %58 = vector.extract_strided_slice %36 {offsets = [3, 0], sizes = [1, 128], strides = [1, 1]} : vector<4x128xf32> to vector<1x128xf32>
    %59 = vector.broadcast %57 : vector<32x1xf32> to vector<32x128xf32>
    %60 = vector.broadcast %58 : vector<1x128xf32> to vector<32x128xf32>
    %61 = arith.mulf %59, %60 : vector<32x128xf32>
    %62 = arith.addf %56, %61 : vector<32x128xf32>
    %c0_21 = arith.constant 0 : index
    %c0_22 = arith.constant 0 : index
    %63 = vector.load %arg9[%c0_21, %c0_22] : memref<1x128xf32, #tpu.memory_space<vmem>>, vector<1x128xf32>
    %c0_23 = arith.constant 0 : index
    %c0_24 = arith.constant 0 : index
    %64 = vector.load %arg10[%c0_23, %c0_24] : memref<1x128xf32, #tpu.memory_space<vmem>>, vector<1x128xf32>
    %cst_25 = arith.constant dense<0.000000e+00> : vector<32xf32>
    %65 = vector.multi_reduction <add>, %62, %cst_25 [1] : vector<32x128xf32> to vector<32xf32>
    %66 = vector.shape_cast %65 : vector<32xf32> to vector<32x1xf32>
    %cst_26 = arith.constant 3.125000e-02 : f32
    %67 = vector.broadcast %cst_26 : f32 to vector<32x1xf32>
    %68 = arith.mulf %66, %67 : vector<32x1xf32>
    %69 = vector.broadcast %68 : vector<32x1xf32> to vector<32x128xf32>
    %70 = arith.subf %62, %69 : vector<32x128xf32>
    %71 = tpu.iota {dimensions = array<i32: 1>} : vector<1x128xi32>
    %c32_i32_27 = arith.constant 32 : i32
    %72 = vector.broadcast %c32_i32_27 : i32 to vector<1x128xi32>
    %73 = arith.cmpi slt, %71, %72 : vector<1x128xi32>
    %74 = arith.mulf %70, %70 : vector<32x128xf32>
    %cst_28 = arith.constant 0.000000e+00 : f32
    %75 = vector.shape_cast %73 : vector<1x128xi1> to vector<1x128xi1>
    %76 = vector.broadcast %75 : vector<1x128xi1> to vector<32x128xi1>
    %77 = vector.broadcast %cst_28 : f32 to vector<32x128xf32>
    %78 = arith.select %76, %74, %77 : vector<32x128xi1>, vector<32x128xf32>
    %cst_29 = arith.constant dense<0.000000e+00> : vector<32xf32>
    %79 = vector.multi_reduction <add>, %78, %cst_29 [1] : vector<32x128xf32> to vector<32xf32>
    %80 = vector.shape_cast %79 : vector<32xf32> to vector<32x1xf32>
    %cst_30 = arith.constant 3.125000e-02 : f32
    %81 = vector.broadcast %cst_30 : f32 to vector<32x1xf32>
    %82 = arith.mulf %80, %81 : vector<32x1xf32>
    %cst_31 = arith.constant 9.99999996E-13 : f32
    %83 = vector.broadcast %cst_31 : f32 to vector<32x1xf32>
    %84 = arith.addf %82, %83 : vector<32x1xf32>
    %85 = math.rsqrt %84 : vector<32x1xf32>
    %86 = vector.broadcast %85 : vector<32x1xf32> to vector<32x128xf32>
    %87 = arith.mulf %70, %86 : vector<32x128xf32>
    %88 = vector.broadcast %63 : vector<1x128xf32> to vector<32x128xf32>
    %89 = arith.mulf %87, %88 : vector<32x128xf32>
    %90 = vector.broadcast %64 : vector<1x128xf32> to vector<32x128xf32>
    %91 = arith.addf %89, %90 : vector<32x128xf32>
    %92 = arith.addf %34, %91 : vector<32x128xf32>
    %c0_32 = arith.constant 0 : index
    %c0_33 = arith.constant 0 : index
    %93 = vector.load %arg11[%c0_32, %c0_33] : memref<32x128xf32, #tpu.memory_space<vmem>>, vector<32x128xf32>
    tpu.vector_store %arg11[%c0_32, %c0_33], %92 {strides = array<i32>} : memref<32x128xf32, #tpu.memory_space<vmem>>, vector<32x128xf32>,
    return
  }
  func.func @transform_0(%arg0: i32) -> (i32, i32) {
    %c0_i32 = arith.constant 0 : i32
    %c0_i32_0 = arith.constant 0 : i32
    return %arg0, %c0_i32 : i32, i32
  }
  func.func @transform_1(%arg0: i32) -> (i32, i32) {
    %c0_i32 = arith.constant 0 : i32
    %c0_i32_0 = arith.constant 0 : i32
    return %arg0, %c0_i32 : i32, i32
  }
  func.func @transform_2(%arg0: i32) -> (i32, i32) {
    %c0_i32 = arith.constant 0 : i32
    %c0_i32_0 = arith.constant 0 : i32
    %c0_i32_1 = arith.constant 0 : i32
    return %c0_i32, %c0_i32_0 : i32, i32
  }
  func.func @transform_3(%arg0: i32) -> (i32, i32) {
    %c0_i32 = arith.constant 0 : i32
    %c0_i32_0 = arith.constant 0 : i32
    %c0_i32_1 = arith.constant 0 : i32
    return %c0_i32, %c0_i32_0 : i32, i32
  }
  func.func @transform_4(%arg0: i32) -> (i32, i32) {
    %c0_i32 = arith.constant 0 : i32
    %c0_i32_0 = arith.constant 0 : i32
    %c0_i32_1 = arith.constant 0 : i32
    return %c0_i32, %c0_i32_0 : i32, i32
  }
  func.func @transform_5(%arg0: i32) -> (i32, i32) {
    %c0_i32 = arith.constant 0 : i32
    %c0_i32_0 = arith.constant 0 : i32
    %c0_i32_1 = arith.constant 0 : i32
    return %c0_i32, %c0_i32_0 : i32, i32
  }
  func.func @transform_6(%arg0: i32) -> (i32, i32) {
    %c0_i32 = arith.constant 0 : i32
    %c0_i32_0 = arith.constant 0 : i32
    %c0_i32_1 = arith.constant 0 : i32
    return %c0_i32, %c0_i32_0 : i32, i32
  }
  func.func @transform_7(%arg0: i32) -> (i32, i32) {
    %c0_i32 = arith.constant 0 : i32
    %c0_i32_0 = arith.constant 0 : i32
    %c0_i32_1 = arith.constant 0 : i32
    return %c0_i32, %c0_i32_0 : i32, i32
  }
  func.func @transform_8(%arg0: i32) -> (i32, i32) {
    %c0_i32 = arith.constant 0 : i32
    %c0_i32_0 = arith.constant 0 : i32
    %c0_i32_1 = arith.constant 0 : i32
    return %c0_i32, %c0_i32_0 : i32, i32
  }
  func.func @transform_9(%arg0: i32) -> (i32, i32) {
    %c0_i32 = arith.constant 0 : i32
    %c0_i32_0 = arith.constant 0 : i32
    %c0_i32_1 = arith.constant 0 : i32
    return %c0_i32, %c0_i32_0 : i32, i32
  }
  func.func @transform_10(%arg0: i32) -> (i32, i32) {
    %c0_i32 = arith.constant 0 : i32
    %c0_i32_0 = arith.constant 0 : i32
    return %arg0, %c0_i32 : i32, i32
  }
}

</mosaic_0001>

<llo_original>
// kernel: tpu_custom_call.1
$region0: #{tpu_custom_call.1}
  #allocation0 [shape = 'u32[]', space=smem, size = 0x4, offset = 0x4, fixed_abs, tag = 'smem constant byte address 0x4 - core index']
  #allocation1 [shape = 'u32[144,128]{1,0:T(1,128)}', space=vmem, size = 0x12000, scoped, tag = 'internal scratch']
  %s0 = inlined_call_operand.vmem [shape: bf16[32,32], index: 0, kind: input, shape index: {}]
  %s1 = inlined_call_operand.vmem [shape: f32[32,4], index: 1, kind: input, shape index: {}]
  %s2 = inlined_call_operand.vmem [shape: bf16[32,128], index: 2, kind: input, shape index: {}]
  %s3 = inlined_call_operand.vmem [shape: f32[1,128], index: 3, kind: input, shape index: {}]
  %s4 = inlined_call_operand.vmem [shape: f32[1,128], index: 4, kind: input, shape index: {}]
  %s5 = inlined_call_operand.vmem [shape: f32[1,128], index: 5, kind: input, shape index: {}]
  %s6 = inlined_call_operand.vmem [shape: f32[4,128], index: 6, kind: input, shape index: {}]
  %s7 = inlined_call_operand.vmem [shape: f32[1,128], index: 7, kind: input, shape index: {}]
  %s8 = inlined_call_operand.vmem [shape: f32[1,128], index: 8, kind: input, shape index: {}]
  %s9 = inlined_call_operand.vmem [shape: f32[1,128], index: 9, kind: input, shape index: {}]
  %s10 = inlined_call_operand.hbm [shape: f32[32,128], index: 10, kind: output, shape index: {}]
  %s11 = sld [smem:[#allocation0]]
  $region50: #{tpu_custom_call.1} parent=0
    _
  %s13 = ssub.s32 1, %s11
  %s14 = scalar_select 0, %s13, %s11
  $region1: #{tpu_custom_call.1} parent=0
    #allocation2 [shape = 'u8[16384]{0}', space=vmem, size = 0x4000, scoped, tag = 'output window, operand 0, single buffered']
    #allocation3 [shape = 's32[1]{0}', space=sflag, size = 0x4, scoped, tag = 'scoped memory for tpu_custom_call.1']
    %15 = vsyncpa [#allocation3], 0
    // Predicated region
    $region2: #{tpu_custom_call.1} parent=1 // pred_check
      _
    $region3: #{tpu_custom_call.1} parent=1 // pred_check_branch
      %17 = sbr.rel (0) target = $region5
    $region4: #{tpu_custom_call.1} parent=1 // pred_region
      _
    $region5: #{tpu_custom_call.1} parent=1 // pred_fallthru
      _
    // Predicated region
    $region6: #{tpu_custom_call.1} parent=1 // pred_check
      _
    $region7: #{tpu_custom_call.1} parent=1 // pred_check_branch
      %19 = sbr.rel (0) target = $region9
    $region8: #{tpu_custom_call.1} parent=1 // pred_region
      _
    $region9: #{tpu_custom_call.1} parent=1 // pred_fallthru
      _
    // Predicated region
    $region10: #{tpu_custom_call.1} parent=1 // pred_check
      _
    $region11: #{tpu_custom_call.1} parent=1 // pred_check_branch
      %21 = sbr.rel (0) target = $region13
    $region12: #{tpu_custom_call.1} parent=1 // pred_region
      _
    $region13: #{tpu_custom_call.1} parent=1 // pred_fallthru
      _
    // Predicated region
    $region14: #{tpu_custom_call.1} parent=1 // pred_check
      _
    $region15: #{tpu_custom_call.1} parent=1 // pred_check_branch
      %23 = sbr.rel (0) target = $region17
    $region16: #{tpu_custom_call.1} parent=1 // pred_region
      _
    $region17: #{tpu_custom_call.1} parent=1 // pred_fallthru
      _
    // Predicated region
    $region18: #{tpu_custom_call.1} parent=1 // pred_check
      _
    $region19: #{tpu_custom_call.1} parent=1 // pred_check_branch
      %25 = sbr.rel (0) target = $region21
    $region20: #{tpu_custom_call.1} parent=1 // pred_region
      _
    $region21: #{tpu_custom_call.1} parent=1 // pred_fallthru
      _
    // Predicated region
    $region22: #{tpu_custom_call.1} parent=1 // pred_check
      _
    $region23: #{tpu_custom_call.1} parent=1 // pred_check_branch
      %27 = sbr.rel (0) target = $region25
    $region24: #{tpu_custom_call.1} parent=1 // pred_region
      _
    $region25: #{tpu_custom_call.1} parent=1 // pred_fallthru
      _
    // Predicated region
    $region26: #{tpu_custom_call.1} parent=1 // pred_check
      _
    $region27: #{tpu_custom_call.1} parent=1 // pred_check_branch
      %29 = sbr.rel (0) target = $region29
    $region28: #{tpu_custom_call.1} parent=1 // pred_region
      _
    $region29: #{tpu_custom_call.1} parent=1 // pred_fallthru
      _
    // Predicated region
    $region30: #{tpu_custom_call.1} parent=1 // pred_check
      _
    $region31: #{tpu_custom_call.1} parent=1 // pred_check_branch
      %31 = sbr.rel (0) target = $region33
    $region32: #{tpu_custom_call.1} parent=1 // pred_region
      _
    $region33: #{tpu_custom_call.1} parent=1 // pred_fallthru
      _
    // Predicated region
    $region34: #{tpu_custom_call.1} parent=1 // pred_check
      _
    $region35: #{tpu_custom_call.1} parent=1 // pred_check_branch
      %33 = sbr.rel (0) target = $region37
    $region36: #{tpu_custom_call.1} parent=1 // pred_region
      _
    $region37: #{tpu_custom_call.1} parent=1 // pred_fallthru
      _
    // Predicated region
    $region38: #{tpu_custom_call.1} parent=1 // pred_check
      _
    $region39: #{tpu_custom_call.1} parent=1 // pred_check_branch
      %35 = sbr.rel (0) target = $region41
    $region40: #{tpu_custom_call.1} parent=1 // pred_region
      _
    $region41: #{tpu_custom_call.1} parent=1 // pred_fallthru
      _
    %v37 = vld [vmem:[%s0] sm:$0xf]
    %v38 = vld [vmem:[%s0 + $0x4] sm:$0xf]
    %v39 = vld [vmem:[%s0 + $0x8] sm:$0xf]
    %v40 = vld [vmem:[%s0 + $0xc] sm:$0xf]
    %v41 = vld [vmem:[%s2] sm:$0xf]
    %v42 = vld [vmem:[%s2 + $0x4] sm:$0xf]
    %v43 = vld [vmem:[%s2 + $0x8] sm:$0xf]
    %v44 = vld [vmem:[%s2 + $0xc] sm:$0xf]
    %v45 = vld [vmem:[%s3] sm:$0x1]
    %v47 = vlaneseq
    %v48 = vshrl.u32 %v47, 7
    %v49 = vsub.s32 0, %v48
    %v50 = vrot.slane %v45, %v49
    %v56 = vunpack.c.l.b16 %v37
    %v57 = vunpack.c.l.b16 %v38
    %v58 = vunpack.c.l.b16 %v39
    %v59 = vunpack.c.l.b16 %v40
    %v60 = vpack.c.b16 %v57, %v56
    %v61 = vpack.c.b16 %v59, %v58
    %v66 = vunpack.c.l.b16 %v41
    %v67 = vunpack.c.l.b16 %v42
    %v68 = vunpack.c.l.b16 %v43
    %v69 = vunpack.c.l.b16 %v44
    %v70 = vpack.c.b16 %v67, %v66
    %v71 = vpack.c.b16 %v69, %v68
    %vm74 = vcmask 261120
    %v76 = vsel %vm74, %v60, 0
    %v79 = vsel %vm74, %v61, 0
    %81 = vmatprep.subr.bf16.mxu0 0
    %82 = vmatpush1.bf16.msra.mxu0 0
    %83 = vmatprep.subr.bf16.mxu0 0
    %84 = vmatpush1.bf16.msra.mxu0 0
    %85 = vmatprep.subr.bf16.mxu0 0
    %86 = vmatpush1.bf16.msra.mxu0 0
    %87 = vmatprep.subr.bf16.mxu0 0
    %88 = vmatpush1.bf16.msra.mxu0 0
    %89 = vmatprep.subr.bf16.mxu0 0
    %90 = vmatpush1.bf16.msra.mxu0 0
    %91 = vmatprep.subr.bf16.mxu0 0
    %92 = vmatpush1.bf16.msra.mxu0 0
    %93 = vmatprep.subr.bf16.mxu0 0
    %94 = vmatpush1.bf16.msra.mxu0 %v71
    %95 = vmatprep.subr.bf16.mxu0 0
    %96 = vmatpush1.bf16.msra.mxu0 %v70
    %97 = vmatprep.subr.bf16.mxu0 0
    %98 = vmatpush2.bf16.msra.mxu0 0
    %99 = vmatprep.subr.bf16.mxu0 0
    %100 = vmatpush2.bf16.msra.mxu0 0
    %101 = vmatprep.subr.bf16.mxu0 0
    %102 = vmatpush2.bf16.msra.mxu0 0
    %103 = vmatprep.subr.bf16.mxu0 0
    %104 = vmatpush2.bf16.msra.mxu0 0
    %105 = vmatprep.subr.bf16.mxu0 0
    %106 = vmatpush2.bf16.msra.mxu0 0
    %107 = vmatprep.subr.bf16.mxu0 0
    %108 = vmatpush2.bf16.msra.mxu0 0
    %109 = vmatprep.subr.bf16.mxu0 0
    %110 = vmatpush2.bf16.msra.mxu0 0
    %111 = vmatprep.subr.bf16.mxu0 0
    %112 = vmatpush2.bf16.msra.mxu0 0
    %113 = vmatprep.mubr.bf16.mxu0 0
    %114 = vmatmul.mubr.bf16.gmra.mxu0 %v76
    %v115 = vpop.f32.mrf.mxu0
    %v116 = vadd.f32 %v50, %v115
    %v117 = vpop.f32.mrf.mxu0
    %v118 = vpop.f32.mrf.mxu0
    %v119 = vadd.f32 %v50, %v118
    %v120 = vpop.f32.mrf.mxu0
    %121 = vmatprep.mubr.bf16.mxu0 0
    %122 = vmatmul.mubr.bf16.gmra.mxu0 %v79
    %v123 = vpop.f32.mrf.mxu0
    %v124 = vadd.f32 %v50, %v123
    %v125 = vpop.f32.mrf.mxu0
    %v126 = vpop.f32.mrf.mxu0
    %v127 = vadd.f32 %v50, %v126
    %v128 = vpop.f32.mrf.mxu0
    %129 = vdwg.mxu0
    %v130 = vld [vmem:[%s4] sm:$0x1]
    %v131 = vld [vmem:[%s5] sm:$0x1]
    %132 = vadd.xlane.f32.xlu0 %v116
    %v133 = vpop.xlane.xlu0 %132
    %134 = vadd.xlane.f32.xlu0 %v119
    %v135 = vpop.xlane.xlu0 %134
    %136 = vadd.xlane.f32.xlu0 %v124
    %v137 = vpop.xlane.xlu0 %136
    %138 = vadd.xlane.f32.xlu0 %v127
    %v139 = vpop.xlane.xlu0 %138
    %v140 = vmul.f32 %v133, 0.03125
    %v141 = vmul.f32 %v135, 0.03125
    %v142 = vmul.f32 %v137, 0.03125
    %v143 = vmul.f32 %v139, 0.03125
    %v144 = vsub.f32 %v116, %v140
    %v145 = vsub.f32 %v119, %v141
    %v146 = vsub.f32 %v124, %v142
    %v147 = vsub.f32 %v127, %v143
    %v148 = vlaneseq
    %v149 = vand.u32 %v148, 127
    %vm150 = vcmp.lt.s32.totalorder %v149, 32
    %v151 = vmul.f32 %v144, %v144
    %v152 = vmul.f32 %v145, %v145
    %v153 = vmul.f32 %v146, %v146
    %v154 = vmul.f32 %v147, %v147
    %v155 = vsel %vm150, 1, 0
    %vm156 = vcmp.eq.s32.totalorder %v155, 1
    %v157 = vsel %vm156, %v151, 0.0
    %v158 = vsel %vm156, %v152, 0.0
    %v159 = vsel %vm156, %v153, 0.0
    %v160 = vsel %vm156, %v154, 0.0
    %161 = vadd.xlane.f32.xlu0 %v157
    %v162 = vpop.xlane.xlu0 %161
    %163 = vadd.xlane.f32.xlu0 %v158
    %v164 = vpop.xlane.xlu0 %163
    %165 = vadd.xlane.f32.xlu0 %v159
    %v166 = vpop.xlane.xlu0 %165
    %167 = vadd.xlane.f32.xlu0 %v160
    %v168 = vpop.xlane.xlu0 %167
    %v169 = vmul.f32 %v162, 0.03125
    %v170 = vmul.f32 %v164, 0.03125
    %v171 = vmul.f32 %v166, 0.03125
    %v172 = vmul.f32 %v168, 0.03125
    %v173 = vadd.f32 %v169, 1e-12
    %v174 = vadd.f32 %v170, 1e-12
    %v175 = vadd.f32 %v171, 1e-12
    %v176 = vadd.f32 %v172, 1e-12
    %v177 = vrsqrt.pop %v173
    %v178 = vrsqrt.pop %v174
    %v179 = vrsqrt.pop %v175
    %v180 = vrsqrt.pop %v176
    %v181 = vmul.f32 %v144, %v177
    %v182 = vmul.f32 %v145, %v178
    %v183 = vmul.f32 %v146, %v179
    %v184 = vmul.f32 %v147, %v180
    %v186 = vlaneseq
    %v187 = vshrl.u32 %v186, 7
    %v188 = vsub.s32 0, %v187
    %v189 = vrot.slane %v130, %v188
    %v191 = vmul.f32 %v181, %v189
    %v192 = vmul.f32 %v182, %v189
    %v193 = vmul.f32 %v183, %v189
    %v194 = vmul.f32 %v184, %v189
    %v196 = vlaneseq
    %v197 = vshrl.u32 %v196, 7
    %v198 = vsub.s32 0, %v197
    %v199 = vrot.slane %v131, %v198
    %v201 = vadd.f32 %v191, %v199
    %v202 = vadd.f32 %v192, %v199
    %v203 = vadd.f32 %v193, %v199
    %v204 = vadd.f32 %v194, %v199
    %v205 = vld [vmem:[%s1] sm:$0xff]
    %v206 = vld [vmem:[%s1 + $0x8] sm:$0xff]
    %v207 = vld [vmem:[%s1 + $0x10] sm:$0xff]
    %v208 = vld [vmem:[%s1 + $0x18] sm:$0xff]
    %v209 = vld [vmem:[%s6] sm:$0xf]
    %v210 = vld [vmem:[%s7] sm:$0x1]
    %212 = vset.pattern.permute.xlu0 0
    %213 = vperm.xlu0 %212, %v205
    %v214 = vpop.permute.xlu0 %213
    %217 = vset.pattern.permute.xlu0 0
    %218 = vperm.xlu0 %217, %v206
    %v219 = vpop.permute.xlu0 %218
    %222 = vset.pattern.permute.xlu0 0
    %223 = vperm.xlu0 %222, %v207
    %v224 = vpop.permute.xlu0 %223
    %227 = vset.pattern.permute.xlu0 0
    %228 = vperm.xlu0 %227, %v208
    %v229 = vpop.permute.xlu0 %228
    %v231 = vlaneseq
    %v232 = vshrl.u32 %v231, 7
    %v233 = vsub.s32 0, %v232
    %v234 = vrot.slane %v209, %v233
    %v235 = vmul.f32 %v214, %v234
    %v236 = vmul.f32 %v219, %v234
    %v237 = vmul.f32 %v224, %v234
    %v238 = vmul.f32 %v229, %v234
    %v240 = vlaneseq
    %v241 = vshrl.u32 %v240, 7
    %v242 = vsub.s32 0, %v241
    %v243 = vrot.slane %v210, %v242
    %v245 = vadd.f32 %v243, %v235
    %v246 = vadd.f32 %v243, %v236
    %v247 = vadd.f32 %v243, %v237
    %v248 = vadd.f32 %v243, %v238
    %249 = vset.pattern.permute.xlu0 1
    %250 = vperm.xlu0 %249, %v205
    %v251 = vpop.permute.xlu0 %250
    %253 = vset.pattern.permute.xlu0 1
    %254 = vperm.xlu0 %253, %v206
    %v255 = vpop.permute.xlu0 %254
    %257 = vset.pattern.permute.xlu0 1
    %258 = vperm.xlu0 %257, %v207
    %v259 = vpop.permute.xlu0 %258
    %261 = vset.pattern.permute.xlu0 1
    %262 = vperm.xlu0 %261, %v208
    %v263 = vpop.permute.xlu0 %262
    %v265 = vlaneseq
    %v266 = vshrl.u32 %v265, 7
    %v267 = vsub.s32 1, %v266
    %v268 = vrot.slane %v209, %v267
    %v269 = vmul.f32 %v251, %v268
    %v270 = vmul.f32 %v255, %v268
    %v271 = vmul.f32 %v259, %v268
    %v272 = vmul.f32 %v263, %v268
    %v273 = vadd.f32 %v245, %v269
    %v274 = vadd.f32 %v246, %v270
    %v275 = vadd.f32 %v247, %v271
    %v276 = vadd.f32 %v248, %v272
    %277 = vset.pattern.permute.xlu0 2
    %278 = vperm.xlu0 %277, %v205
    %v279 = vpop.permute.xlu0 %278
    %281 = vset.pattern.permute.xlu0 2
    %282 = vperm.xlu0 %281, %v206
    %v283 = vpop.permute.xlu0 %282
    %285 = vset.pattern.permute.xlu0 2
    %286 = vperm.xlu0 %285, %v207
    %v287 = vpop.permute.xlu0 %286
    %289 = vset.pattern.permute.xlu0 2
    %290 = vperm.xlu0 %289, %v208
    %v291 = vpop.permute.xlu0 %290
    %v293 = vlaneseq
    %v294 = vshrl.u32 %v293, 7
    %v295 = vsub.s32 2, %v294
    %v296 = vrot.slane %v209, %v295
    %v297 = vmul.f32 %v279, %v296
    %v298 = vmul.f32 %v283, %v296
    %v299 = vmul.f32 %v287, %v296
    %v300 = vmul.f32 %v291, %v296
    %v301 = vadd.f32 %v273, %v297
    %v302 = vadd.f32 %v274, %v298
    %v303 = vadd.f32 %v275, %v299
    %v304 = vadd.f32 %v276, %v300
    %305 = vset.pattern.permute.xlu0 3
    %306 = vperm.xlu0 %305, %v205
    %v307 = vpop.permute.xlu0 %306
    %309 = vset.pattern.permute.xlu0 3
    %310 = vperm.xlu0 %309, %v206
    %v311 = vpop.permute.xlu0 %310
    %313 = vset.pattern.permute.xlu0 3
    %314 = vperm.xlu0 %313, %v207
    %v315 = vpop.permute.xlu0 %314
    %317 = vset.pattern.permute.xlu0 3
    %318 = vperm.xlu0 %317, %v208
    %v319 = vpop.permute.xlu0 %318
    %v321 = vlaneseq
    %v322 = vshrl.u32 %v321, 7
    %v323 = vsub.s32 3, %v322
    %v324 = vrot.slane %v209, %v323
    %v325 = vmul.f32 %v307, %v324
    %v326 = vmul.f32 %v311, %v324
    %v327 = vmul.f32 %v315, %v324
    %v328 = vmul.f32 %v319, %v324
    %v329 = vadd.f32 %v301, %v325
    %v330 = vadd.f32 %v302, %v326
    %v331 = vadd.f32 %v303, %v327
    %v332 = vadd.f32 %v304, %v328
    %v333 = vld [vmem:[%s8] sm:$0x1]
    %v334 = vld [vmem:[%s9] sm:$0x1]
    %335 = vadd.xlane.f32.xlu0 %v329
    %v336 = vpop.xlane.xlu0 %335
    %337 = vadd.xlane.f32.xlu0 %v330
    %v338 = vpop.xlane.xlu0 %337
    %339 = vadd.xlane.f32.xlu0 %v331
    %v340 = vpop.xlane.xlu0 %339
    %341 = vadd.xlane.f32.xlu0 %v332
    %v342 = vpop.xlane.xlu0 %341
    %v343 = vmul.f32 %v336, 0.03125
    %v344 = vmul.f32 %v338, 0.03125
    %v345 = vmul.f32 %v340, 0.03125
    %v346 = vmul.f32 %v342, 0.03125
    %v347 = vsub.f32 %v329, %v343
    %v348 = vsub.f32 %v330, %v344
    %v349 = vsub.f32 %v331, %v345
    %v350 = vsub.f32 %v332, %v346
    %v351 = vmul.f32 %v347, %v347
    %v352 = vmul.f32 %v348, %v348
    %v353 = vmul.f32 %v349, %v349
    %v354 = vmul.f32 %v350, %v350
    %v355 = vsel %vm156, %v351, 0.0
    %v356 = vsel %vm156, %v352, 0.0
    %v357 = vsel %vm156, %v353, 0.0
    %v358 = vsel %vm156, %v354, 0.0
    %359 = vadd.xlane.f32.xlu0 %v355
    %v360 = vpop.xlane.xlu0 %359
    %361 = vadd.xlane.f32.xlu0 %v356
    %v362 = vpop.xlane.xlu0 %361
    %363 = vadd.xlane.f32.xlu0 %v357
    %v364 = vpop.xlane.xlu0 %363
    %365 = vadd.xlane.f32.xlu0 %v358
    %v366 = vpop.xlane.xlu0 %365
    %v367 = vmul.f32 %v360, 0.03125
    %v368 = vmul.f32 %v362, 0.03125
    %v369 = vmul.f32 %v364, 0.03125
    %v370 = vmul.f32 %v366, 0.03125
    %v371 = vadd.f32 %v367, 1e-12
    %v372 = vadd.f32 %v368, 1e-12
    %v373 = vadd.f32 %v369, 1e-12
    %v374 = vadd.f32 %v370, 1e-12
    %v375 = vrsqrt.pop %v371
    %v376 = vrsqrt.pop %v372
    %v377 = vrsqrt.pop %v373
    %v378 = vrsqrt.pop %v374
    %v379 = vmul.f32 %v347, %v375
    %v380 = vmul.f32 %v348, %v376
    %v381 = vmul.f32 %v349, %v377
    %v382 = vmul.f32 %v350, %v378
    %v384 = vlaneseq
    %v385 = vshrl.u32 %v384, 7
    %v386 = vsub.s32 0, %v385
    %v387 = vrot.slane %v333, %v386
    %v389 = vmul.f32 %v379, %v387
    %v390 = vmul.f32 %v380, %v387
    %v391 = vmul.f32 %v381, %v387
    %v392 = vmul.f32 %v382, %v387
    %v394 = vlaneseq
    %v395 = vshrl.u32 %v394, 7
    %v396 = vsub.s32 0, %v395
    %v397 = vrot.slane %v334, %v396
    %v399 = vadd.f32 %v389, %v397
    %v400 = vadd.f32 %v390, %v397
    %v401 = vadd.f32 %v391, %v397
    %v402 = vadd.f32 %v392, %v397
    %v403 = vadd.f32 %v201, %v399
    %v404 = vadd.f32 %v202, %v400
    %v405 = vadd.f32 %v203, %v401
    %v406 = vadd.f32 %v204, %v402
    %407 = vst [vmem:[#allocation2] sm:$0xff] %v403
    %408 = vst [vmem:[#allocation2 + $0x8] sm:$0xff] %v404
    %409 = vst [vmem:[#allocation2 + $0x10] sm:$0xff] %v405
    %410 = vst [vmem:[#allocation2 + $0x18] sm:$0xff] %v406
    // Predicated region
    $region42: #{tpu_custom_call.1} parent=1 // pred_check
      _
    $region43: #{tpu_custom_call.1} parent=1 // pred_check_branch
      %412 = sbr.rel (0) target = $region45
    $region44: #{tpu_custom_call.1} parent=1 // pred_region
      %s414 = ssub.s32 512, 512
      %415 = vsyncadd [#allocation3], %s414
      %s416 = sshll.u32 [#allocation2], 4
      %s417 = int_to_ptr.vmem [resolvable:$true] %s416
      %422 = dma.vmem_to_hbm [thread:$0]  %s417, 512, %s10, [#allocation3], 128, 128, 8
    $region45: #{tpu_custom_call.1} parent=1 // pred_fallthru
      _
    // Predicated region
    $region46: #{tpu_custom_call.1} parent=1 // pred_check
      _
    $region47: #{tpu_custom_call.1} parent=1 // pred_check_branch
      %424 = sbr.rel (0) target = $region49
    $region48: #{tpu_custom_call.1} parent=1 // pred_region
      %425 = dma.done [#allocation3], 512
    $region49: #{tpu_custom_call.1} parent=1 // pred_fallthru
      _
    %426 = vsyncpa [#allocation3], 1

// kernel: tpu_custom_call.1
$region0: #{tpu_custom_call.1}
  #allocation0 [shape = 'u32[]', space=smem, size = 0x4, offset = 0x4, fixed_abs, tag = 'smem constant byte address 0x4 - core index']
  #allocation1 [shape = 'u32[144,128]{1,0:T(1,128)}', space=vmem, size = 0x12000, scoped, tag = 'internal scratch']
  %s0 = inlined_call_operand.vmem [shape: bf16[32,32], index: 0, kind: input, shape index: {}]
  %s1 = inlined_call_operand.vmem [shape: f32[32,4], index: 1, kind: input, shape index: {}]
  %s2 = inlined_call_operand.vmem [shape: bf16[32,128], index: 2, kind: input, shape index: {}]
  %s3 = inlined_call_operand.vmem [shape: f32[1,128], index: 3, kind: input, shape index: {}]
  %s4 = inlined_call_operand.vmem [shape: f32[1,128], index: 4, kind: input, shape index: {}]
  %s5 = inlined_call_operand.vmem [shape: f32[1,128], index: 5, kind: input, shape index: {}]
  %s6 = inlined_call_operand.vmem [shape: f32[4,128], index: 6, kind: input, shape index: {}]
  %s7 = inlined_call_operand.vmem [shape: f32[1,128], index: 7, kind: input, shape index: {}]
  %s8 = inlined_call_operand.vmem [shape: f32[1,128], index: 8, kind: input, shape index: {}]
  %s9 = inlined_call_operand.vmem [shape: f32[1,128], index: 9, kind: input, shape index: {}]
  %s10 = inlined_call_operand.hbm [shape: f32[32,128], index: 10, kind: output, shape index: {}]
  %s11 = sld [smem:[#allocation0]]
  $region50: #{tpu_custom_call.1} parent=0
    _
  %s13 = ssub.s32 1, %s11
  %s14 = scalar_select 0, %s13, %s11
  $region1: #{tpu_custom_call.1} parent=0
    #allocation2 [shape = 'u8[16384]{0}', space=vmem, size = 0x4000, scoped, tag = 'output window, operand 0, single buffered']
    #allocation3 [shape = 's32[1]{0}', space=sflag, size = 0x4, scoped, tag = 'scoped memory for tpu_custom_call.1']
    %15 = vsyncpa [#allocation3], 0
    // Predicated region
    $region2: #{tpu_custom_call.1} parent=1 // pred_check
      _
    $region3: #{tpu_custom_call.1} parent=1 // pred_check_branch
      %17 = sbr.rel (0) target = $region5
    $region4: #{tpu_custom_call.1} parent=1 // pred_region
      _
    $region5: #{tpu_custom_call.1} parent=1 // pred_fallthru
      _
    // Predicated region
    $region6: #{tpu_custom_call.1} parent=1 // pred_check
      _
    $region7: #{tpu_custom_call.1} parent=1 // pred_check_branch
      %19 = sbr.rel (0) target = $region9
    $region8: #{tpu_custom_call.1} parent=1 // pred_region
      _
    $region9: #{tpu_custom_call.1} parent=1 // pred_fallthru
      _
    // Predicated region
    $region10: #{tpu_custom_call.1} parent=1 // pred_check
      _
    $region11: #{tpu_custom_call.1} parent=1 // pred_check_branch
      %21 = sbr.rel (0) target = $region13
    $region12: #{tpu_custom_call.1} parent=1 // pred_region
      _
    $region13: #{tpu_custom_call.1} parent=1 // pred_fallthru
      _
    // Predicated region
    $region14: #{tpu_custom_call.1} parent=1 // pred_check
      _
    $region15: #{tpu_custom_call.1} parent=1 // pred_check_branch
      %23 = sbr.rel (0) target = $region17
    $region16: #{tpu_custom_call.1} parent=1 // pred_region
      _
    $region17: #{tpu_custom_call.1} parent=1 // pred_fallthru
      _
    // Predicated region
    $region18: #{tpu_custom_call.1} parent=1 // pred_check
      _
    $region19: #{tpu_custom_call.1} parent=1 // pred_check_branch
      %25 = sbr.rel (0) target = $region21
    $region20: #{tpu_custom_call.1} parent=1 // pred_region
      _
    $region21: #{tpu_custom_call.1} parent=1 // pred_fallthru
      _
    // Predicated region
    $region22: #{tpu_custom_call.1} parent=1 // pred_check
      _
    $region23: #{tpu_custom_call.1} parent=1 // pred_check_branch
      %27 = sbr.rel (0) target = $region25
    $region24: #{tpu_custom_call.1} parent=1 // pred_region
      _
    $region25: #{tpu_custom_call.1} parent=1 // pred_fallthru
      _
    // Predicated region
    $region26: #{tpu_custom_call.1} parent=1 // pred_check
      _
    $region27: #{tpu_custom_call.1} parent=1 // pred_check_branch
      %29 = sbr.rel (0) target = $region29
    $region28: #{tpu_custom_call.1} parent=1 // pred_region
      _
    $region29: #{tpu_custom_call.1} parent=1 // pred_fallthru
      _
    // Predicated region
    $region30: #{tpu_custom_call.1} parent=1 // pred_check
      _
    $region31: #{tpu_custom_call.1} parent=1 // pred_check_branch
      %31 = sbr.rel (0) target = $region33
    $region32: #{tpu_custom_call.1} parent=1 // pred_region
      _
    $region33: #{tpu_custom_call.1} parent=1 // pred_fallthru
      _
    // Predicated region
    $region34: #{tpu_custom_call.1} parent=1 // pred_check
      _
    $region35: #{tpu_custom_call.1} parent=1 // pred_check_branch
      %33 = sbr.rel (0) target = $region37
    $region36: #{tpu_custom_call.1} parent=1 // pred_region
      _
    $region37: #{tpu_custom_call.1} parent=1 // pred_fallthru
      _
    // Predicated region
    $region38: #{tpu_custom_call.1} parent=1 // pred_check
      _
    $region39: #{tpu_custom_call.1} parent=1 // pred_check_branch
      %35 = sbr.rel (0) target = $region41
    $region40: #{tpu_custom_call.1} parent=1 // pred_region
      _
    $region41: #{tpu_custom_call.1} parent=1 // pred_fallthru
      _
    %v37 = vld [vmem:[%s0] sm:$0xf]
    %v38 = vld [vmem:[%s0 + $0x4] sm:$0xf]
    %v39 = vld [vmem:[%s0 + $0x8] sm:$0xf]
    %v40 = vld [vmem:[%s0 + $0xc] sm:$0xf]
    %v41 = vld [vmem:[%s2] sm:$0xf]
    %v42 = vld [vmem:[%s2 + $0x4] sm:$0xf]
    %v43 = vld [vmem:[%s2 + $0x8] sm:$0xf]
    %v44 = vld [vmem:[%s2 + $0xc] sm:$0xf]
    %v45 = vld [vmem:[%s3] sm:$0x1]
    %v47 = vlaneseq
    %v48 = vshrl.u32 %v47, 7
    %v49 = vsub.s32 0, %v48
    %v50 = vrot.slane %v45, %v49
    %v56 = vunpack.c.l.b16 %v37
    %v57 = vunpack.c.l.b16 %v38
    %v58 = vunpack.c.l.b16 %v39
    %v59 = vunpack.c.l.b16 %v40
    %v60 = vpack.c.b16 %v57, %v56
    %v61 = vpack.c.b16 %v59, %v58
    %v66 = vunpack.c.l.b16 %v41
    %v67 = vunpack.c.l.b16 %v42
    %v68 = vunpack.c.l.b16 %v43
    %v69 = vunpack.c.l.b16 %v44
    %v70 = vpack.c.b16 %v67, %v66
    %v71 = vpack.c.b16 %v69, %v68
    %vm74 = vcmask 261120
    %v76 = vsel %vm74, %v60, 0
    %v79 = vsel %vm74, %v61, 0
    %81 = vmatprep.subr.bf16.mxu0 0
    %82 = vmatpush1.bf16.msra.mxu0 0
    %83 = vmatprep.subr.bf16.mxu0 0
    %84 = vmatpush1.bf16.msra.mxu0 0
    %85 = vmatprep.subr.bf16.mxu0 0
    %86 = vmatpush1.bf16.msra.mxu0 0
    %87 = vmatprep.subr.bf16.mxu0 0
    %88 = vmatpush1.bf16.msra.mxu0 0
    %89 = vmatprep.subr.bf16.mxu0 0
    %90 = vmatpush1.bf16.msra.mxu0 0
    %91 = vmatprep.subr.bf16.mxu0 0
    %92 = vmatpush1.bf16.msra.mxu0 0
    %93 = vmatprep.subr.bf16.mxu0 0
    %94 = vmatpush1.bf16.msra.mxu0 %v71
    %95 = vmatprep.subr.bf16.mxu0 0
    %96 = vmatpush1.bf16.msra.mxu0 %v70
    %97 = vmatprep.subr.bf16.mxu0 0
    %98 = vmatpush2.bf16.msra.mxu0 0
    %99 = vmatprep.subr.bf16.mxu0 0
    %100 = vmatpush2.bf16.msra.mxu0 0
    %101 = vmatprep.subr.bf16.mxu0 0
    %102 = vmatpush2.bf16.msra.mxu0 0
    %103 = vmatprep.subr.bf16.mxu0 0
    %104 = vmatpush2.bf16.msra.mxu0 0
    %105 = vmatprep.subr.bf16.mxu0 0
    %106 = vmatpush2.bf16.msra.mxu0 0
    %107 = vmatprep.subr.bf16.mxu0 0
    %108 = vmatpush2.bf16.msra.mxu0 0
    %109 = vmatprep.subr.bf16.mxu0 0
    %110 = vmatpush2.bf16.msra.mxu0 0
    %111 = vmatprep.subr.bf16.mxu0 0
    %112 = vmatpush2.bf16.msra.mxu0 0
    %113 = vmatprep.mubr.bf16.mxu0 0
    %114 = vmatmul.mubr.bf16.gmra.mxu0 %v76
    %v115 = vpop.f32.mrf.mxu0
    %v116 = vadd.f32 %v50, %v115
    %v117 = vpop.f32.mrf.mxu0
    %v118 = vpop.f32.mrf.mxu0
    %v119 = vadd.f32 %v50, %v118
    %v120 = vpop.f32.mrf.mxu0
    %121 = vmatprep.mubr.bf16.mxu0 0
    %122 = vmatmul.mubr.bf16.gmra.mxu0 %v79
    %v123 = vpop.f32.mrf.mxu0
    %v124 = vadd.f32 %v50, %v123
    %v125 = vpop.f32.mrf.mxu0
    %v126 = vpop.f32.mrf.mxu0
    %v127 = vadd.f32 %v50, %v126
    %v128 = vpop.f32.mrf.mxu0
    %129 = vdwg.mxu0
    %v130 = vld [vmem:[%s4] sm:$0x1]
    %v131 = vld [vmem:[%s5] sm:$0x1]
    %132 = vadd.xlane.f32.xlu0 %v116
    %v133 = vpop.xlane.xlu0 %132
    %134 = vadd.xlane.f32.xlu0 %v119
    %v135 = vpop.xlane.xlu0 %134
    %136 = vadd.xlane.f32.xlu0 %v124
    %v137 = vpop.xlane.xlu0 %136
    %138 = vadd.xlane.f32.xlu0 %v127
    %v139 = vpop.xlane.xlu0 %138
    %v140 = vmul.f32 %v133, 0.03125
    %v141 = vmul.f32 %v135, 0.03125
    %v142 = vmul.f32 %v137, 0.03125
    %v143 = vmul.f32 %v139, 0.03125
    %v144 = vsub.f32 %v116, %v140
    %v145 = vsub.f32 %v119, %v141
    %v146 = vsub.f32 %v124, %v142
    %v147 = vsub.f32 %v127, %v143
    %v148 = vlaneseq
    %v149 = vand.u32 %v148, 127
    %vm150 = vcmp.lt.s32.totalorder %v149, 32
    %v151 = vmul.f32 %v144, %v144
    %v152 = vmul.f32 %v145, %v145
    %v153 = vmul.f32 %v146, %v146
    %v154 = vmul.f32 %v147, %v147
    %v155 = vsel %vm150, 1, 0
    %vm156 = vcmp.eq.s32.totalorder %v155, 1
    %v157 = vsel %vm156, %v151, 0.0
    %v158 = vsel %vm156, %v152, 0.0
    %v159 = vsel %vm156, %v153, 0.0
    %v160 = vsel %vm156, %v154, 0.0
    %161 = vadd.xlane.f32.xlu0 %v157
    %v162 = vpop.xlane.xlu0 %161
    %163 = vadd.xlane.f32.xlu0 %v158
    %v164 = vpop.xlane.xlu0 %163
    %165 = vadd.xlane.f32.xlu0 %v159
    %v166 = vpop.xlane.xlu0 %165
    %167 = vadd.xlane.f32.xlu0 %v160
    %v168 = vpop.xlane.xlu0 %167
    %v169 = vmul.f32 %v162, 0.03125
    %v170 = vmul.f32 %v164, 0.03125
    %v171 = vmul.f32 %v166, 0.03125
    %v172 = vmul.f32 %v168, 0.03125
    %v173 = vadd.f32 %v169, 1e-12
    %v174 = vadd.f32 %v170, 1e-12
    %v175 = vadd.f32 %v171, 1e-12
    %v176 = vadd.f32 %v172, 1e-12
    %v177 = vrsqrt.pop %v173
    %v178 = vrsqrt.pop %v174
    %v179 = vrsqrt.pop %v175
    %v180 = vrsqrt.pop %v176
    %v181 = vmul.f32 %v144, %v177
    %v182 = vmul.f32 %v145, %v178
    %v183 = vmul.f32 %v146, %v179
    %v184 = vmul.f32 %v147, %v180
    %v186 = vlaneseq
    %v187 = vshrl.u32 %v186, 7
    %v188 = vsub.s32 0, %v187
    %v189 = vrot.slane %v130, %v188
    %v191 = vmul.f32 %v181, %v189
    %v192 = vmul.f32 %v182, %v189
    %v193 = vmul.f32 %v183, %v189
    %v194 = vmul.f32 %v184, %v189
    %v196 = vlaneseq
    %v197 = vshrl.u32 %v196, 7
    %v198 = vsub.s32 0, %v197
    %v199 = vrot.slane %v131, %v198
    %v201 = vadd.f32 %v191, %v199
    %v202 = vadd.f32 %v192, %v199
    %v203 = vadd.f32 %v193, %v199
    %v204 = vadd.f32 %v194, %v199
    %v205 = vld [vmem:[%s1] sm:$0xff]
    %v206 = vld [vmem:[%s1 + $0x8] sm:$0xff]
    %v207 = vld [vmem:[%s1 + $0x10] sm:$0xff]
    %v208 = vld [vmem:[%s1 + $0x18] sm:$0xff]
    %v209 = vld [vmem:[%s6] sm:$0xf]
    %v210 = vld [vmem:[%s7] sm:$0x1]
    %212 = vset.pattern.permute.xlu0 0
    %213 = vperm.xlu0 %212, %v205
    %v214 = vpop.permute.xlu0 %213
    %217 = vset.pattern.permute.xlu0 0
    %218 = vperm.xlu0 %217, %v206
    %v219 = vpop.permute.xlu0 %218
    %222 = vset.pattern.permute.xlu0 0
    %223 = vperm.xlu0 %222, %v207
    %v224 = vpop.permute.xlu0 %223
    %227 = vset.pattern.permute.xlu0 0
    %228 = vperm.xlu0 %227, %v208
    %v229 = vpop.permute.xlu0 %228
    %v231 = vlaneseq
    %v232 = vshrl.u32 %v231, 7
    %v233 = vsub.s32 0, %v232
    %v234 = vrot.slane %v209, %v233
    %v235 = vmul.f32 %v214, %v234
    %v236 = vmul.f32 %v219, %v234
    %v237 = vmul.f32 %v224, %v234
    %v238 = vmul.f32 %v229, %v234
    %v240 = vlaneseq
    %v241 = vshrl.u32 %v240, 7
    %v242 = vsub.s32 0, %v241
    %v243 = vrot.slane %v210, %v242
    %v245 = vadd.f32 %v243, %v235
    %v246 = vadd.f32 %v243, %v236
    %v247 = vadd.f32 %v243, %v237
    %v248 = vadd.f32 %v243, %v238
    %249 = vset.pattern.permute.xlu0 1
    %250 = vperm.xlu0 %249, %v205
    %v251 = vpop.permute.xlu0 %250
    %253 = vset.pattern.permute.xlu0 1
    %254 = vperm.xlu0 %253, %v206
    %v255 = vpop.permute.xlu0 %254
    %257 = vset.pattern.permute.xlu0 1
    %258 = vperm.xlu0 %257, %v207
    %v259 = vpop.permute.xlu0 %258
    %261 = vset.pattern.permute.xlu0 1
    %262 = vperm.xlu0 %261, %v208
    %v263 = vpop.permute.xlu0 %262
    %v265 = vlaneseq
    %v266 = vshrl.u32 %v265, 7
    %v267 = vsub.s32 1, %v266
    %v268 = vrot.slane %v209, %v267
    %v269 = vmul.f32 %v251, %v268
    %v270 = vmul.f32 %v255, %v268
    %v271 = vmul.f32 %v259, %v268
    %v272 = vmul.f32 %v263, %v268
    %v273 = vadd.f32 %v245, %v269
    %v274 = vadd.f32 %v246, %v270
    %v275 = vadd.f32 %v247, %v271
    %v276 = vadd.f32 %v248, %v272
    %277 = vset.pattern.permute.xlu0 2
    %278 = vperm.xlu0 %277, %v205
    %v279 = vpop.permute.xlu0 %278
    %281 = vset.pattern.permute.xlu0 2
    %282 = vperm.xlu0 %281, %v206
    %v283 = vpop.permute.xlu0 %282
    %285 = vset.pattern.permute.xlu0 2
    %286 = vperm.xlu0 %285, %v207
    %v287 = vpop.permute.xlu0 %286
    %289 = vset.pattern.permute.xlu0 2
    %290 = vperm.xlu0 %289, %v208
    %v291 = vpop.permute.xlu0 %290
    %v293 = vlaneseq
    %v294 = vshrl.u32 %v293, 7
    %v295 = vsub.s32 2, %v294
    %v296 = vrot.slane %v209, %v295
    %v297 = vmul.f32 %v279, %v296
    %v298 = vmul.f32 %v283, %v296
    %v299 = vmul.f32 %v287, %v296
    %v300 = vmul.f32 %v291, %v296
    %v301 = vadd.f32 %v273, %v297
    %v302 = vadd.f32 %v274, %v298
    %v303 = vadd.f32 %v275, %v299
    %v304 = vadd.f32 %v276, %v300
    %305 = vset.pattern.permute.xlu0 3
    %306 = vperm.xlu0 %305, %v205
    %v307 = vpop.permute.xlu0 %306
    %309 = vset.pattern.permute.xlu0 3
    %310 = vperm.xlu0 %309, %v206
    %v311 = vpop.permute.xlu0 %310
    %313 = vset.pattern.permute.xlu0 3
    %314 = vperm.xlu0 %313, %v207
    %v315 = vpop.permute.xlu0 %314
    %317 = vset.pattern.permute.xlu0 3
    %318 = vperm.xlu0 %317, %v208
    %v319 = vpop.permute.xlu0 %318
    %v321 = vlaneseq
    %v322 = vshrl.u32 %v321, 7
    %v323 = vsub.s32 3, %v322
    %v324 = vrot.slane %v209, %v323
    %v325 = vmul.f32 %v307, %v324
    %v326 = vmul.f32 %v311, %v324
    %v327 = vmul.f32 %v315, %v324
    %v328 = vmul.f32 %v319, %v324
    %v329 = vadd.f32 %v301, %v325
    %v330 = vadd.f32 %v302, %v326
    %v331 = vadd.f32 %v303, %v327
    %v332 = vadd.f32 %v304, %v328
    %v333 = vld [vmem:[%s8] sm:$0x1]
    %v334 = vld [vmem:[%s9] sm:$0x1]
    %335 = vadd.xlane.f32.xlu0 %v329
    %v336 = vpop.xlane.xlu0 %335
    %337 = vadd.xlane.f32.xlu0 %v330
    %v338 = vpop.xlane.xlu0 %337
    %339 = vadd.xlane.f32.xlu0 %v331
    %v340 = vpop.xlane.xlu0 %339
    %341 = vadd.xlane.f32.xlu0 %v332
    %v342 = vpop.xlane.xlu0 %341
    %v343 = vmul.f32 %v336, 0.03125
    %v344 = vmul.f32 %v338, 0.03125
    %v345 = vmul.f32 %v340, 0.03125
    %v346 = vmul.f32 %v342, 0.03125
    %v347 = vsub.f32 %v329, %v343
    %v348 = vsub.f32 %v330, %v344
    %v349 = vsub.f32 %v331, %v345
    %v350 = vsub.f32 %v332, %v346
    %v351 = vmul.f32 %v347, %v347
    %v352 = vmul.f32 %v348, %v348
    %v353 = vmul.f32 %v349, %v349
    %v354 = vmul.f32 %v350, %v350
    %v355 = vsel %vm156, %v351, 0.0
    %v356 = vsel %vm156, %v352, 0.0
    %v357 = vsel %vm156, %v353, 0.0
    %v358 = vsel %vm156, %v354, 0.0
    %359 = vadd.xlane.f32.xlu0 %v355
    %v360 = vpop.xlane.xlu0 %359
    %361 = vadd.xlane.f32.xlu0 %v356
    %v362 = vpop.xlane.xlu0 %361
    %363 = vadd.xlane.f32.xlu0 %v357
    %v364 = vpop.xlane.xlu0 %363
    %365 = vadd.xlane.f32.xlu0 %v358
    %v366 = vpop.xlane.xlu0 %365
    %v367 = vmul.f32 %v360, 0.03125
    %v368 = vmul.f32 %v362, 0.03125
    %v369 = vmul.f32 %v364, 0.03125
    %v370 = vmul.f32 %v366, 0.03125
    %v371 = vadd.f32 %v367, 1e-12
    %v372 = vadd.f32 %v368, 1e-12
    %v373 = vadd.f32 %v369, 1e-12
    %v374 = vadd.f32 %v370, 1e-12
    %v375 = vrsqrt.pop %v371
    %v376 = vrsqrt.pop %v372
    %v377 = vrsqrt.pop %v373
    %v378 = vrsqrt.pop %v374
    %v379 = vmul.f32 %v347, %v375
    %v380 = vmul.f32 %v348, %v376
    %v381 = vmul.f32 %v349, %v377
    %v382 = vmul.f32 %v350, %v378
    %v384 = vlaneseq
    %v385 = vshrl.u32 %v384, 7
    %v386 = vsub.s32 0, %v385
    %v387 = vrot.slane %v333, %v386
    %v389 = vmul.f32 %v379, %v387
    %v390 = vmul.f32 %v380, %v387
    %v391 = vmul.f32 %v381, %v387
    %v392 = vmul.f32 %v382, %v387
    %v394 = vlaneseq
    %v395 = vshrl.u32 %v394, 7
    %v396 = vsub.s32 0, %v395
    %v397 = vrot.slane %v334, %v396
    %v399 = vadd.f32 %v389, %v397
    %v400 = vadd.f32 %v390, %v397
    %v401 = vadd.f32 %v391, %v397
    %v402 = vadd.f32 %v392, %v397
    %v403 = vadd.f32 %v201, %v399
    %v404 = vadd.f32 %v202, %v400
    %v405 = vadd.f32 %v203, %v401
    %v406 = vadd.f32 %v204, %v402
    %407 = vst [vmem:[#allocation2] sm:$0xff] %v403
    %408 = vst [vmem:[#allocation2 + $0x8] sm:$0xff] %v404
    %409 = vst [vmem:[#allocation2 + $0x10] sm:$0xff] %v405
    %410 = vst [vmem:[#allocation2 + $0x18] sm:$0xff] %v406
    // Predicated region
    $region42: #{tpu_custom_call.1} parent=1 // pred_check
      _
    $region43: #{tpu_custom_call.1} parent=1 // pred_check_branch
      %412 = sbr.rel (0) target = $region45
    $region44: #{tpu_custom_call.1} parent=1 // pred_region
      %s414 = ssub.s32 512, 512
      %415 = vsyncadd [#allocation3], %s414
      %s416 = sshll.u32 [#allocation2], 4
      %s417 = int_to_ptr.vmem [resolvable:$true] %s416
      %422 = dma.vmem_to_hbm [thread:$0]  %s417, 512, %s10, [#allocation3], 128, 128, 8
    $region45: #{tpu_custom_call.1} parent=1 // pred_fallthru
      _
    // Predicated region
    $region46: #{tpu_custom_call.1} parent=1 // pred_check
      _
    $region47: #{tpu_custom_call.1} parent=1 // pred_check_branch
      %424 = sbr.rel (0) target = $region49
    $region48: #{tpu_custom_call.1} parent=1 // pred_region
      %425 = dma.done [#allocation3], 512
    $region49: #{tpu_custom_call.1} parent=1 // pred_fallthru
      _
    %426 = vsyncpa [#allocation3], 1

</llo_original>
